<compile_context>
chip_gen: v6e
topology: v6e:2x2x1
jax: 0.10.0
libtpu: 0.0.40
codegen_flags: <defaults>
</compile_context>

<pallas_src>
import jax
import jax.numpy as jnp
from jax.experimental import pallas as pl
from jax.experimental.pallas import tpu as pltpu

LOG10_TO_LN = 2.30259           # constant used by the module

_LANE = 512                     # lane-dense slab width (multiple of 128)
_TARGET_TILE_BYTES = 4 << 20    # ~4 MiB input tile; 4x (in+out, double-buffered) ~= 16 MiB


def _make_affine_kernel(a: float, b: float):
    # a, b are Python floats -> scalar immediates in the lowered kernel (no captures).
    def _kernel(x_ref, o_ref):
        o_ref[...] = x_ref[...] * a + b
    return _kernel


def _row_tile_for(rows: int, cols: int, itemsize: int) -> int:
    """Rows per grid step: ~_TARGET_TILE_BYTES, sublane(8)-aligned, or the whole array."""
    rt = _TARGET_TILE_BYTES // max(1, cols * itemsize)
    rt = max(8, (rt // 8) * 8)
    if rt >= rows:
        return rows             # block == full array dims: always a legal block shape
    return rt


def after_diffusion(x, spec_min, spec_max):
    """x: (B, 1, T, M) float32. spec_min/spec_max: Python float scalar hyperparams.

    Returns (B, T, M) float32, identical to the PyTorch module's output.
    """
    x3 = jnp.squeeze(x, axis=1)                    # glue: (B, T, M)
    B, T, M = x3.shape
    dtype = x3.dtype
    itemsize = jnp.dtype(dtype).itemsize

    # Fold scalar hyperparameters into two compile-time immediates: out = x * a + b.
    # Computed in Python float (f64) so low-precision input dtypes don't double-round.
    a = float((spec_max - spec_min) * 0.5 * LOG10_TO_LN)
    b = float((spec_max + spec_min) * 0.5 * LOG10_TO_LN)
    kernel = _make_affine_kernel(a, b)

    total = B * T * M
    if total % _LANE == 0:
        # Lane-dense flattened slab: unmasked full-lane stores, zero pad/slice glue.
        rows, cols = total // _LANE, _LANE
    else:
        # (B*T, M): last dim equals the full array dim (legal block even if M % 128 != 0);
        # accept masked edge stores instead of paying extra full HBM passes for pad/slice.
        rows, cols = B * T, M
    x2d = x3.reshape(rows, cols)

    row_tile = _row_tile_for(rows, cols, itemsize)
    grid = pl.cdiv(rows, row_tile)                 # partial edge block is masked by Pallas

    out2d = pl.pallas_call(
        kernel,
        out_shape=jax.ShapeDtypeStruct((rows, cols), dtype),
        grid=(grid,),
        in_specs=[pl.BlockSpec((row_tile, cols), lambda i: (i, 0))],
        out_specs=pl.BlockSpec((row_tile, cols), lambda i: (i, 0)),
        input_output_aliases={0: 0},               # reuse the input buffer for the output
        compiler_params=pltpu.CompilerParams(
            dimension_semantics=("parallel",),     # megacore sharding on v7x; harmless elsewhere
            vmem_limit_bytes=40 << 20,             # headroom for 4 MiB double-buffered tiles
        ),
    )(x2d)

    return out2d.reshape(B, T, M)


def _reference(x, spec_min, spec_max):
    # Pure-JAX mirror of the PyTorch forward (including the permute/transpose pair).
    x = jnp.squeeze(x, axis=1)                     # (B, T, M)
    x = jnp.transpose(x, (0, 2, 1))                # (B, M, T)
    d = (spec_max - spec_min) / 2.0
    m = (spec_max + spec_min) / 2.0
    mel = (x * d + m) * LOG10_TO_LN
    return jnp.transpose(mel, (0, 2, 1))           # (B, T, M)


if __name__ == "__main__":
    key = jax.random.PRNGKey(0)
    B, T, M = 2, 16, 32
    x = jax.random.normal(key, (B, 1, T, M), dtype=jnp.float32)

    # Scalar hyperparameters of the module.
    spec_min = -12.0
    spec_max = 2.0

    # Compute the reference first (the kernel donates/aliases its 2D input view).
    ref = jax.block_until_ready(_reference(x, spec_min, spec_max))

    out = after_diffusion(x, spec_min, spec_max)
    out = jax.block_until_ready(out)

    assert out.shape == (B, T, M)
    assert jnp.allclose(out, ref, atol=1e-5, rtol=1e-5), "mismatch vs reference"

    print("KERNEL_OK")
</pallas_src>

<mosaic_0001>
module attributes {stable_mosaic.version = 11 : i64} {
  func.func @_kernel(%arg0: i32, %arg1: memref<2x512xf32, #tpu.memory_space<vmem>>, %arg2: memref<2x512xf32, #tpu.memory_space<vmem>>) attributes {dimension_semantics = [#tpu.dimension_semantics<parallel>], iteration_bounds = array<i64: 1>, scalar_prefetch = 0 : i64, scratch_operands = 0 : i64, tpu.core_type = #tpu.core_type<tc>, window_params = [{transform_indices = @transform_0, window_bounds = array<i64: 2, 512>}, {transform_indices = @transform_1, window_bounds = array<i64: 2, 512>}]} {
    %c0 = arith.constant 0 : index
    %c0_0 = arith.constant 0 : index
    %0 = vector.load %arg1[%c0, %c0_0] : memref<2x512xf32, #tpu.memory_space<vmem>>, vector<2x512xf32>
    %cst = arith.constant 16.1181297 : f32
    %1 = vector.broadcast %cst : f32 to vector<2x512xf32>
    %2 = arith.mulf %0, %1 : vector<2x512xf32>
    %cst_1 = arith.constant -11.5129499 : f32
    %3 = vector.broadcast %cst_1 : f32 to vector<2x512xf32>
    %4 = arith.addf %2, %3 : vector<2x512xf32>
    %c0_2 = arith.constant 0 : index
    %c0_3 = arith.constant 0 : index
    %5 = vector.load %arg2[%c0_2, %c0_3] : memref<2x512xf32, #tpu.memory_space<vmem>>, vector<2x512xf32>
    tpu.vector_store %arg2[%c0_2, %c0_3], %4 {strides = array<i32>} : memref<2x512xf32, #tpu.memory_space<vmem>>, vector<2x512xf32>,
    return
  }
  func.func @transform_0(%arg0: i32) -> (i32, i32) {
    %c0_i32 = arith.constant 0 : i32
    %c0_i32_0 = arith.constant 0 : i32
    return %arg0, %c0_i32 : i32, i32
  }
  func.func @transform_1(%arg0: i32) -> (i32, i32) {
    %c0_i32 = arith.constant 0 : i32
    %c0_i32_0 = arith.constant 0 : i32
    return %arg0, %c0_i32 : i32, i32
  }
}

</mosaic_0001>

<llo_original>
// kernel: tpu_custom_call.1
$region0: #{tpu_custom_call.1}
  #allocation0 [shape = 'u32[]', space=smem, size = 0x4, offset = 0x4, fixed_abs, tag = 'smem constant byte address 0x4 - core index']
  #allocation1 [shape = 'u32[144,128]{1,0:T(1,128)}', space=vmem, size = 0x12000, scoped, tag = 'internal scratch']
  %s0 = inlined_call_operand.hbm [shape: f32[2,512], index: 0, kind: input, shape index: {}, may-alias: {0,1}]
  %s1 = inlined_call_operand.hbm [shape: f32[2,512], index: 1, kind: output, shape index: {}, may-alias: {0,1}]
  %s2 = sld [smem:[#allocation0]]
  $region18: #{tpu_custom_call.1} parent=0
    _
  %s4 = ssub.s32 1, %s2
  %s5 = scalar_select 0, %s4, %s2
  $region1: #{tpu_custom_call.1} parent=0
    #allocation2 [shape = 'u8[4096]{0}', space=vmem, size = 0x1000, scoped, tag = 'input window, operand 0, single buffered']
    #allocation3 [shape = 's32[1]{0}', space=sflag, size = 0x4, scoped, tag = 'scoped memory for tpu_custom_call.1']
    #allocation4 [shape = 's32[1]{0}', space=sflag, size = 0x4, scoped, tag = 'scoped memory for tpu_custom_call.1']
    #allocation5 [shape = 'u8[4096]{0}', space=vmem, size = 0x1000, scoped, tag = 'output window, operand 0, single buffered']
    %6 = vsyncpa [#allocation3], 0
    %7 = vsyncpa [#allocation4], 0
    // Predicated region
    $region2: #{tpu_custom_call.1} parent=1 // pred_check
      _
    $region3: #{tpu_custom_call.1} parent=1 // pred_check_branch
      %9 = sbr.rel (0) target = $region5
    $region4: #{tpu_custom_call.1} parent=1 // pred_region
      %s11 = ssub.s32 128, 128
      %12 = vsyncadd [#allocation3], %s11
      %s14 = sshll.u32 [#allocation2], 4
      %s15 = int_to_ptr.vmem [resolvable:$true] %s14
      %17 = dma.hbm_to_vmem [thread:$0]  %s0, 128, %s15, [#allocation3]
    $region5: #{tpu_custom_call.1} parent=1 // pred_fallthru
      _
    // Predicated region
    $region6: #{tpu_custom_call.1} parent=1 // pred_check
      _
    $region7: #{tpu_custom_call.1} parent=1 // pred_check_branch
      %19 = sbr.rel (0) target = $region9
    $region8: #{tpu_custom_call.1} parent=1 // pred_region
      %20 = dma.done [#allocation3], 128
    $region9: #{tpu_custom_call.1} parent=1 // pred_fallthru
      _
    %v21 = vld [vmem:[#allocation2] sm:$0xff]
    %v22 = vmul.f32 %v21, 16.11813
    %v23 = vadd.f32 %v22, -11.51295
    %24 = vst [vmem:[#allocation5] sm:$0xff] %v23
    // Predicated region
    $region10: #{tpu_custom_call.1} parent=1 // pred_check
      _
    $region11: #{tpu_custom_call.1} parent=1 // pred_check_branch
      %26 = sbr.rel (0) target = $region13
    $region12: #{tpu_custom_call.1} parent=1 // pred_region
      %s28 = ssub.s32 128, 128
      %29 = vsyncadd [#allocation4], %s28
      %s31 = sshll.u32 [#allocation5], 4
      %s32 = int_to_ptr.vmem [resolvable:$true] %s31
      %34 = dma.vmem_to_hbm [thread:$0]  %s32, 128, %s1, [#allocation4]
    $region13: #{tpu_custom_call.1} parent=1 // pred_fallthru
      _
    // Predicated region
    $region14: #{tpu_custom_call.1} parent=1 // pred_check
      _
    $region15: #{tpu_custom_call.1} parent=1 // pred_check_branch
      %36 = sbr.rel (0) target = $region17
    $region16: #{tpu_custom_call.1} parent=1 // pred_region
      %37 = dma.done [#allocation4], 128
    $region17: #{tpu_custom_call.1} parent=1 // pred_fallthru
      _
    %38 = vsyncpa [#allocation3], 1
    %39 = vsyncpa [#allocation4], 1

</llo_original>
